<compile_context>
chip_gen: v7x
topology: tpu7x:2x2x1
jax: 0.10.0
libtpu: 0.0.40
codegen_flags: <defaults>
</compile_context>

<pallas_src>
import jax
import jax.numpy as jnp
from jax.experimental import pallas as pl
from jax.experimental.pallas import tpu as pltpu


_INV_SQRT2 = 0.7071067811865476


def _erf_poly(z):
    """erf via Abramowitz & Stegun 7.1.26 (|err| <= 1.5e-7).

    Uses only ops guaranteed to lower in Mosaic (abs/where/exp/mul/add), so the
    exact-erf GELU of torch's default nn.GELU() is reproduced to ~1e-7 without
    relying on an erf primitive lowering.
    """
    a1, a2, a3, a4, a5 = 0.254829592, -0.284496736, 1.421413741, -1.453152027, 1.061405429
    p = 0.3275911
    sign = jnp.where(z < 0.0, -1.0, 1.0)
    az = jnp.abs(z)
    t = 1.0 / (1.0 + p * az)
    poly = ((((a5 * t + a4) * t + a3) * t + a2) * t + a1) * t
    return sign * (1.0 - poly * jnp.exp(-az * az))


def _gelu_exact(h):
    return 0.5 * h * (1.0 + _erf_poly(h * _INV_SQRT2))


def _mlp_kernel(x_ref, w1_ref, b1_ref, w2_ref, b2_ref, o_ref):
    # x_ref: (1, C_in, T)   w1_ref: (C_hid, C_in)   b1_ref: (C_hid, 1)
    # w2_ref: (C_out, C_hid) b2_ref: (C_out, 1)     o_ref: (1, C_out, T)
    x = x_ref[0].astype(jnp.float32)                              # (C_in, T)
    h = jnp.dot(w1_ref[...].astype(jnp.float32), x,
                preferred_element_type=jnp.float32)               # MXU: (C_hid, T)
    h = h + b1_ref[...].astype(jnp.float32)                       # lane-broadcast bias
    h = _gelu_exact(h)
    y = jnp.dot(w2_ref[...].astype(jnp.float32), h,
                preferred_element_type=jnp.float32)               # MXU: (C_out, T)
    y = y + b2_ref[...].astype(jnp.float32)
    o_ref[0] = y.astype(o_ref.dtype)


def mlp_1x1(x, w1, b1, w2, b2, *, tile_hw=512):
    """PoolFormer Mlp forward.

    x : [B, C_in, H, W] (NCHW, matching the PyTorch module)
    w1: [C_hid, C_in]   (Conv2d(C_in, C_hid, 1).weight squeezed)
    b1: [C_hid]
    w2: [C_out, C_hid]
    b2: [C_out]
    Returns [B, C_out, H, W] with x.dtype.
    """
    B, C_in, H, W = x.shape
    C_hid = w1.shape[0]
    C_out = w2.shape[0]
    HW = H * W

    # Free reshape (same memory layout) -- no transposes anywhere.
    x3 = x.reshape(B, C_in, HW)
    b1_2 = b1.reshape(C_hid, 1)
    b2_2 = b2.reshape(C_out, 1)

    # Lane tile: full H*W when small, otherwise a multiple of 128; the ragged
    # tail (if any) is a padded block via the pl.cdiv grid.
    if HW <= tile_hw:
        t = HW
    else:
        t = max(128, (tile_hw // 128) * 128)
    n_s = pl.cdiv(HW, t)

    out3 = pl.pallas_call(
        _mlp_kernel,
        out_shape=jax.ShapeDtypeStruct((B, C_out, HW), x.dtype),
        grid_spec=pltpu.PrefetchScalarGridSpec(
            num_scalar_prefetch=0,
            grid=(B, n_s),
            in_specs=[
                pl.BlockSpec((1, C_in, t), lambda b, s: (b, 0, s)),
                pl.BlockSpec((C_hid, C_in), lambda b, s: (0, 0)),   # resident
                pl.BlockSpec((C_hid, 1), lambda b, s: (0, 0)),      # resident
                pl.BlockSpec((C_out, C_hid), lambda b, s: (0, 0)),  # resident
                pl.BlockSpec((C_out, 1), lambda b, s: (0, 0)),      # resident
            ],
            out_specs=pl.BlockSpec((1, C_out, t), lambda b, s: (b, 0, s)),
        ),
        compiler_params=pltpu.CompilerParams(
            dimension_semantics=("parallel", "parallel"),
            vmem_limit_bytes=48 * 1024 * 1024,
        ),
    )(x3, w1, b1_2, w2, b2_2)

    return out3.reshape(B, C_out, H, W)


def _reference(x, w1, b1, w2, b2):
    hp = jax.lax.Precision.HIGHEST
    h = jnp.einsum("hc,bcxy->bhxy", w1, x, precision=hp) + b1[None, :, None, None]
    h = jax.nn.gelu(h, approximate=False)   # torch nn.GELU() default (exact erf)
    y = jnp.einsum("oh,bhxy->boxy", w2, h, precision=hp) + b2[None, :, None, None]
    return y


if __name__ == "__main__":
    B, C, H, W = 2, 4, 16, 16
    hidden = 32

    key = jax.random.PRNGKey(0)
    kx, k1, k2 = jax.random.split(key, 3)
    x = jax.random.normal(kx, (B, C, H, W), dtype=jnp.float32)

    # Conv2d(C, hidden, 1) / Conv2d(hidden, C, 1) weights: trunc_normal(std=0.02)
    # style init (plain normal is fine for a deterministic test), bias = 0.
    w1 = 0.02 * jax.random.normal(k1, (hidden, C), dtype=jnp.float32)
    b1 = jnp.zeros((hidden,), dtype=jnp.float32)
    w2 = 0.02 * jax.random.normal(k2, (C, hidden), dtype=jnp.float32)
    b2 = jnp.zeros((C,), dtype=jnp.float32)

    out = mlp_1x1(x, w1, b1, w2, b2)
    out = jax.block_until_ready(out)

    ref = _reference(x, w1, b1, w2, b2)
    assert out.shape == (B, C, H, W)
    err = float(jnp.max(jnp.abs(out - ref)))
    assert jnp.allclose(out, ref, atol=1e-4, rtol=1e-4), f"max abs err={err}"

    print("KERNEL_OK")
</pallas_src>

<mosaic_0001>
module attributes {stable_mosaic.version = 11 : i64} {
  func.func @_mlp_kernel(%arg0: i32, %arg1: i32, %arg2: memref<1x4x256xf32, #tpu.memory_space<vmem>>, %arg3: memref<32x4xf32, #tpu.memory_space<vmem>>, %arg4: memref<32x1xf32, #tpu.memory_space<vmem>>, %arg5: memref<4x32xf32, #tpu.memory_space<vmem>>, %arg6: memref<4x1xf32, #tpu.memory_space<vmem>>, %arg7: memref<1x4x256xf32, #tpu.memory_space<vmem>>) attributes {dimension_semantics = [#tpu.dimension_semantics<parallel>, #tpu.dimension_semantics<parallel>], iteration_bounds = array<i64: 2, 1>, scalar_prefetch = 0 : i64, scratch_operands = 0 : i64, tpu.core_type = #tpu.core_type<tc>, window_params = [{transform_indices = @transform_0, window_bounds = array<i64: 1, 4, 256>}, {pipeline_mode = #tpu.pipeline_mode<synchronous>, transform_indices = @transform_1, window_bounds = array<i64: 32, 4>}, {pipeline_mode = #tpu.pipeline_mode<synchronous>, transform_indices = @transform_2, window_bounds = array<i64: 32, 1>}, {pipeline_mode = #tpu.pipeline_mode<synchronous>, transform_indices = @transform_3, window_bounds = array<i64: 4, 32>}, {pipeline_mode = #tpu.pipeline_mode<synchronous>, transform_indices = @transform_4, window_bounds = array<i64: 4, 1>}, {transform_indices = @transform_5, window_bounds = array<i64: 1, 4, 256>}]} {
    %c0 = arith.constant 0 : index
    %c0_0 = arith.constant 0 : index
    %c0_1 = arith.constant 0 : index
    %0 = vector.load %arg2[%c0, %c0_0, %c0_1] : memref<1x4x256xf32, #tpu.memory_space<vmem>>, vector<1x4x256xf32>
    %1 = vector.shape_cast %0 : vector<1x4x256xf32> to vector<4x256xf32>
    %c0_2 = arith.constant 0 : index
    %c0_3 = arith.constant 0 : index
    %2 = vector.load %arg3[%c0_2, %c0_3] : memref<32x4xf32, #tpu.memory_space<vmem>>, vector<32x4xf32>
    %cst = arith.constant dense<0.000000e+00> : vector<32x256xf32>
    %3 = tpu.matmul %2, %1, %cst {dimension_numbers = #tpu.dot_dimension_numbers<[1], [0], [0], [1], [0, 0, 1, 1], [], []>} : vector<32x4xf32>, vector<4x256xf32>, vector<32x256xf32> -> vector<32x256xf32>
    %c0_4 = arith.constant 0 : index
    %c0_5 = arith.constant 0 : index
    %4 = vector.load %arg4[%c0_4, %c0_5] : memref<32x1xf32, #tpu.memory_space<vmem>>, vector<32x1xf32>
    %5 = vector.broadcast %4 : vector<32x1xf32> to vector<32x256xf32>
    %6 = arith.addf %3, %5 : vector<32x256xf32>
    %cst_6 = arith.constant 5.000000e-01 : f32
    %7 = vector.broadcast %cst_6 : f32 to vector<32x256xf32>
    %8 = arith.mulf %7, %6 : vector<32x256xf32>
    %cst_7 = arith.constant 0.707106769 : f32
    %9 = vector.broadcast %cst_7 : f32 to vector<32x256xf32>
    %10 = arith.mulf %6, %9 : vector<32x256xf32>
    %cst_8 = arith.constant 0.000000e+00 : f32
    %11 = vector.broadcast %cst_8 : f32 to vector<32x256xf32>
    %12 = arith.cmpf olt, %10, %11 : vector<32x256xf32>
    %cst_9 = arith.constant -1.000000e+00 : f32
    %cst_10 = arith.constant 1.000000e+00 : f32
    %13 = vector.broadcast %cst_9 : f32 to vector<32x256xf32>
    %14 = vector.broadcast %cst_10 : f32 to vector<32x256xf32>
    %15 = arith.select %12, %13, %14 : vector<32x256xi1>, vector<32x256xf32>
    %16 = math.absf %10 : vector<32x256xf32>
    %cst_11 = arith.constant 0.327591091 : f32
    %17 = vector.broadcast %cst_11 : f32 to vector<32x256xf32>
    %18 = arith.mulf %17, %16 : vector<32x256xf32>
    %cst_12 = arith.constant 1.000000e+00 : f32
    %19 = vector.broadcast %cst_12 : f32 to vector<32x256xf32>
    %20 = arith.addf %19, %18 : vector<32x256xf32>
    %cst_13 = arith.constant 1.000000e+00 : f32
    %21 = vector.broadcast %cst_13 : f32 to vector<32x256xf32>
    %22 = arith.divf %21, %20 : vector<32x256xf32>
    %cst_14 = arith.constant 1.06140542 : f32
    %23 = vector.broadcast %cst_14 : f32 to vector<32x256xf32>
    %24 = arith.mulf %23, %22 : vector<32x256xf32>
    %cst_15 = arith.constant -1.45315206 : f32
    %25 = vector.broadcast %cst_15 : f32 to vector<32x256xf32>
    %26 = arith.addf %24, %25 : vector<32x256xf32>
    %27 = arith.mulf %26, %22 : vector<32x256xf32>
    %cst_16 = arith.constant 1.42141378 : f32
    %28 = vector.broadcast %cst_16 : f32 to vector<32x256xf32>
    %29 = arith.addf %27, %28 : vector<32x256xf32>
    %30 = arith.mulf %29, %22 : vector<32x256xf32>
    %cst_17 = arith.constant -0.284496725 : f32
    %31 = vector.broadcast %cst_17 : f32 to vector<32x256xf32>
    %32 = arith.addf %30, %31 : vector<32x256xf32>
    %33 = arith.mulf %32, %22 : vector<32x256xf32>
    %cst_18 = arith.constant 0.254829586 : f32
    %34 = vector.broadcast %cst_18 : f32 to vector<32x256xf32>
    %35 = arith.addf %33, %34 : vector<32x256xf32>
    %36 = arith.mulf %35, %22 : vector<32x256xf32>
    %cst_19 = arith.constant 0.000000e+00 : f32
    %37 = vector.broadcast %cst_19 : f32 to vector<32x256xf32>
    %38 = arith.subf %37, %16 : vector<32x256xf32>
    %39 = arith.mulf %38, %16 : vector<32x256xf32>
    %40 = math.exp %39 : vector<32x256xf32>
    %41 = arith.mulf %36, %40 : vector<32x256xf32>
    %cst_20 = arith.constant 1.000000e+00 : f32
    %42 = vector.broadcast %cst_20 : f32 to vector<32x256xf32>
    %43 = arith.subf %42, %41 : vector<32x256xf32>
    %44 = arith.mulf %15, %43 : vector<32x256xf32>
    %cst_21 = arith.constant 1.000000e+00 : f32
    %45 = vector.broadcast %cst_21 : f32 to vector<32x256xf32>
    %46 = arith.addf %45, %44 : vector<32x256xf32>
    %47 = arith.mulf %8, %46 : vector<32x256xf32>
    %c0_22 = arith.constant 0 : index
    %c0_23 = arith.constant 0 : index
    %48 = vector.load %arg5[%c0_22, %c0_23] : memref<4x32xf32, #tpu.memory_space<vmem>>, vector<4x32xf32>
    %cst_24 = arith.constant dense<0.000000e+00> : vector<4x256xf32>
    %49 = tpu.matmul %48, %47, %cst_24 {dimension_numbers = #tpu.dot_dimension_numbers<[1], [0], [0], [1], [0, 0, 1, 1], [], []>} : vector<4x32xf32>, vector<32x256xf32>, vector<4x256xf32> -> vector<4x256xf32>
    %c0_25 = arith.constant 0 : index
    %c0_26 = arith.constant 0 : index
    %50 = vector.load %arg6[%c0_25, %c0_26] : memref<4x1xf32, #tpu.memory_space<vmem>>, vector<4x1xf32>
    %51 = vector.broadcast %50 : vector<4x1xf32> to vector<4x256xf32>
    %52 = arith.addf %49, %51 : vector<4x256xf32>
    %c0_27 = arith.constant 0 : index
    %c0_28 = arith.constant 0 : index
    %c0_29 = arith.constant 0 : index
    %53 = vector.load %arg7[%c0_27, %c0_28, %c0_29] : memref<1x4x256xf32, #tpu.memory_space<vmem>>, vector<1x4x256xf32>
    %54 = vector.shape_cast %53 : vector<1x4x256xf32> to vector<4x256xf32>
    %55 = vector.shape_cast %52 : vector<4x256xf32> to vector<1x4x256xf32>
    tpu.vector_store %arg7[%c0_27, %c0_28, %c0_29], %55 {strides = array<i32>} : memref<1x4x256xf32, #tpu.memory_space<vmem>>, vector<1x4x256xf32>,
    return
  }
  func.func @transform_0(%arg0: i32, %arg1: i32) -> (i32, i32, i32) {
    %c0_i32 = arith.constant 0 : i32
    %c0_i32_0 = arith.constant 0 : i32
    return %arg0, %c0_i32, %arg1 : i32, i32, i32
  }
  func.func @transform_1(%arg0: i32, %arg1: i32) -> (i32, i32) {
    %c0_i32 = arith.constant 0 : i32
    %c0_i32_0 = arith.constant 0 : i32
    %c0_i32_1 = arith.constant 0 : i32
    return %c0_i32, %c0_i32_0 : i32, i32
  }
  func.func @transform_2(%arg0: i32, %arg1: i32) -> (i32, i32) {
    %c0_i32 = arith.constant 0 : i32
    %c0_i32_0 = arith.constant 0 : i32
    %c0_i32_1 = arith.constant 0 : i32
    return %c0_i32, %c0_i32_0 : i32, i32
  }
  func.func @transform_3(%arg0: i32, %arg1: i32) -> (i32, i32) {
    %c0_i32 = arith.constant 0 : i32
    %c0_i32_0 = arith.constant 0 : i32
    %c0_i32_1 = arith.constant 0 : i32
    return %c0_i32, %c0_i32_0 : i32, i32
  }
  func.func @transform_4(%arg0: i32, %arg1: i32) -> (i32, i32) {
    %c0_i32 = arith.constant 0 : i32
    %c0_i32_0 = arith.constant 0 : i32
    %c0_i32_1 = arith.constant 0 : i32
    return %c0_i32, %c0_i32_0 : i32, i32
  }
  func.func @transform_5(%arg0: i32, %arg1: i32) -> (i32, i32, i32) {
    %c0_i32 = arith.constant 0 : i32
    %c0_i32_0 = arith.constant 0 : i32
    return %arg0, %c0_i32, %arg1 : i32, i32, i32
  }
}

</mosaic_0001>

<llo_original>
// kernel: tpu_custom_call.1
$region0: #{tpu_custom_call.1}
  #allocation0 [shape = 'u32[]', space=smem, size = 0x4, offset = 0x4, fixed_abs, tag = 'smem constant byte address 0x4 - core index']
  #allocation1 [shape = 'u32[144,128]{1,0:T(1,128)}', space=vmem, size = 0x12000, scoped, tag = 'internal scratch']
  %s0 = inlined_call_operand.vmem [shape: f32[2,4,256], index: 0, kind: input, shape index: {}]
  %s1 = inlined_call_operand.vmem [shape: f32[32,4], index: 1, kind: input, shape index: {}]
  %s2 = inlined_call_operand.vmem [shape: f32[32,1], index: 2, kind: input, shape index: {}]
  %s3 = inlined_call_operand.vmem [shape: f32[4,32], index: 3, kind: input, shape index: {}]
  %s4 = inlined_call_operand.vmem [shape: f32[4,1], index: 4, kind: input, shape index: {}]
  %s5 = inlined_call_operand.hbm [shape: f32[2,4,256], index: 5, kind: output, shape index: {}]
  %s6 = sld [smem:[#allocation0]]
  $region53: #{tpu_custom_call.1} parent=0
    _
  %s8 = ssub.s32 1, %s6
  %s9 = scalar_select 0, %s8, %s6
  $region1: #{tpu_custom_call.1} parent=0
    #allocation2 [shape = 'u8[8192]{0}', space=vmem, size = 0x2000, scoped, tag = 'output window, operand 0']
    #allocation3 [shape = 's32[2]{0}', space=sflag, size = 0x8, scoped, tag = 'scoped memory for tpu_custom_call.1']
    %10 = vsyncpa [#allocation3], 0
    %s11 = scalar_lea.sflag [#allocation3], 1
    %12 = vsyncpa %s11, 0
    loop: start=0, step=1, limit=4
    $region2: #{tpu_custom_call.1} parent=1 // loop_pre_header
      _
    $region3: #{tpu_custom_call.1} parent=1 // loop_header
      %s14 = sphi 0, %s18
      %p15 = scmp.ge.s32.totalorder %s14, 4
      %s21 = sphi 0, %s33
      %s22 = sphi 0, %s29
      %s23 = sphi 0, %s21
      %s24 = sphi 0, %s22
      %s25 = sphi 0, %s23
      %s26 = sphi 0, %s24
      %s38 = sphi 0, %s40
      %s41 = sphi 0, %s38
      %s42 = sphi 0, %s41
      %s58 = sphi 0, %s42
      %s62 = sphi 0, %s62
      %s64 = sphi 0, %s62
      %s65 = sphi 0, %s64
      %s79 = sphi 0, %s65
      %s83 = sphi 0, %s83
      %s85 = sphi 0, %s83
      %s86 = sphi 0, %s85
      %s100 = sphi 0, %s86
      %s104 = sphi 0, %s104
      %s106 = sphi 0, %s104
      %s107 = sphi 0, %s106
      %s121 = sphi 0, %s107
      %s125 = sphi 0, %s125
      %s127 = sphi 0, %s125
      %s128 = sphi 0, %s127
      %s142 = sphi 0, %s128
      %s150 = sphi 0, %s152
      %s153 = sphi 0, %s150
      %s154 = sphi 0, %s153
      %s170 = sphi 0, %s154
    $region4: #{tpu_custom_call.1} parent=1 // loop_header_branch
      %17 = sbr.rel (%p15) target = $region8
    $region5: #{tpu_custom_call.1} parent=1 // loop_body
      %s19 = ssub.s32 %s14, 1
      %s20 = ssub.s32 %s14, 2
      %s27 = sadd.s32 1, %s22
      %p28 = scmp.ge.s32.totalorder %s27, 1
      %s29 = scalar_select %p28, 0, %s27
      %s30 = sadd.s32 1, %s21
      %s31 = scalar_select %p28, %s30, %s21
      %p32 = scmp.ge.s32.totalorder %s31, 2
      %s33 = scalar_select %p32, 0, %s31
      %s34 = ssub.s32 %s21, %s33
      %s35 = ssub.s32 %s22, %s29
      %s36 = sor.u32 %s34, %s35
      %p37 = scmp.eq.s32.totalorder %s36, 0
      %s39 = sadd.s32 %s38, 1
      %s40 = scalar_select %p37, %s38, %s39
      %p43 = pneg %p37
      %p44 = scmp.eq.s32.totalorder %s14, 1
      %p45 = por %p43, %p44
      %p46 = scmp.ne.s32.totalorder %s38, %s41
      %p47 = scmp.eq.s32.totalorder %s14, 0
      %p48 = por %p46, %p47
      %p49 = scmp.ne.s32.totalorder %s38, %s41
      %p50 = scmp.eq.s32.totalorder %s19, 1
      %p51 = por %p49, %p50
      %p52 = scmp.ne.s32.totalorder %s41, %s42
      %p53 = scmp.eq.s32.totalorder %s19, 0
      %p54 = por %p52, %p53
      %p55 = scmp.ne.s32.totalorder %s41, %s42
      %p56 = scmp.eq.s32.totalorder %s20, 1
      %p57 = por %p55, %p56
      %p59 = scmp.ne.s32.totalorder %s42, %s58
      %p60 = scmp.eq.s32.totalorder %s20, 0
      %p61 = por %p59, %p60
      %s63 = sadd.s32 %s62, 1
      %p66 = scmp.eq.s32.totalorder %s14, 1
      %p67 = scmp.ne.s32.totalorder %s62, %s64
      %p68 = scmp.eq.s32.totalorder %s14, 0
      %p69 = por %p67, %p68
      %p70 = scmp.ne.s32.totalorder %s62, %s64
      %p71 = scmp.eq.s32.totalorder %s19, 1
      %p72 = por %p70, %p71
      %p73 = scmp.ne.s32.totalorder %s64, %s65
      %p74 = scmp.eq.s32.totalorder %s19, 0
      %p75 = por %p73, %p74
      %p76 = scmp.ne.s32.totalorder %s64, %s65
      %p77 = scmp.eq.s32.totalorder %s20, 1
      %p78 = por %p76, %p77
      %p80 = scmp.ne.s32.totalorder %s65, %s79
      %p81 = scmp.eq.s32.totalorder %s20, 0
      %p82 = por %p80, %p81
      %s84 = sadd.s32 %s83, 1
      %p87 = scmp.eq.s32.totalorder %s14, 1
      %p88 = scmp.ne.s32.totalorder %s83, %s85
      %p89 = scmp.eq.s32.totalorder %s14, 0
      %p90 = por %p88, %p89
      %p91 = scmp.ne.s32.totalorder %s83, %s85
      %p92 = scmp.eq.s32.totalorder %s19, 1
      %p93 = por %p91, %p92
      %p94 = scmp.ne.s32.totalorder %s85, %s86
      %p95 = scmp.eq.s32.totalorder %s19, 0
      %p96 = por %p94, %p95
      %p97 = scmp.ne.s32.totalorder %s85, %s86
      %p98 = scmp.eq.s32.totalorder %s20, 1
      %p99 = por %p97, %p98
      %p101 = scmp.ne.s32.totalorder %s86, %s100
      %p102 = scmp.eq.s32.totalorder %s20, 0
      %p103 = por %p101, %p102
      %s105 = sadd.s32 %s104, 1
      %p108 = scmp.eq.s32.totalorder %s14, 1
      %p109 = scmp.ne.s32.totalorder %s104, %s106
      %p110 = scmp.eq.s32.totalorder %s14, 0
      %p111 = por %p109, %p110
      %p112 = scmp.ne.s32.totalorder %s104, %s106
      %p113 = scmp.eq.s32.totalorder %s19, 1
      %p114 = por %p112, %p113
      %p115 = scmp.ne.s32.totalorder %s106, %s107
      %p116 = scmp.eq.s32.totalorder %s19, 0
      %p117 = por %p115, %p116
      %p118 = scmp.ne.s32.totalorder %s106, %s107
      %p119 = scmp.eq.s32.totalorder %s20, 1
      %p120 = por %p118, %p119
      %p122 = scmp.ne.s32.totalorder %s107, %s121
      %p123 = scmp.eq.s32.totalorder %s20, 0
      %p124 = por %p122, %p123
      %s126 = sadd.s32 %s125, 1
      %p129 = scmp.eq.s32.totalorder %s14, 1
      %p130 = scmp.ne.s32.totalorder %s125, %s127
      %p131 = scmp.eq.s32.totalorder %s14, 0
      %p132 = por %p130, %p131
      %p133 = scmp.ne.s32.totalorder %s125, %s127
      %p134 = scmp.eq.s32.totalorder %s19, 1
      %p135 = por %p133, %p134
      %p136 = scmp.ne.s32.totalorder %s127, %s128
      %p137 = scmp.eq.s32.totalorder %s19, 0
      %p138 = por %p136, %p137
      %p139 = scmp.ne.s32.totalorder %s127, %s128
      %p140 = scmp.eq.s32.totalorder %s20, 1
      %p141 = por %p139, %p140
      %p143 = scmp.ne.s32.totalorder %s128, %s142
      %p144 = scmp.eq.s32.totalorder %s20, 0
      %p145 = por %p143, %p144
      %s146 = ssub.s32 %s21, %s33
      %s147 = ssub.s32 %s22, %s29
      %s148 = sor.u32 %s146, %s147
      %p149 = scmp.eq.s32.totalorder %s148, 0
      %s151 = sadd.s32 %s150, 1
      %s152 = scalar_select %p149, %s150, %s151
      %p155 = pneg %p149
      %p156 = scmp.eq.s32.totalorder %s14, 1
      %p157 = por %p155, %p156
      %p158 = scmp.ne.s32.totalorder %s150, %s153
      %p159 = scmp.eq.s32.totalorder %s14, 0
      %p160 = por %p158, %p159
      %p161 = scmp.ne.s32.totalorder %s150, %s153
      %p162 = scmp.eq.s32.totalorder %s19, 1
      %p163 = por %p161, %p162
      %p164 = scmp.ne.s32.totalorder %s153, %s154
      %p165 = scmp.eq.s32.totalorder %s19, 0
      %p166 = por %p164, %p165
      %p167 = scmp.ne.s32.totalorder %s153, %s154
      %p168 = scmp.eq.s32.totalorder %s20, 1
      %p169 = por %p167, %p168
      %p171 = scmp.ne.s32.totalorder %s154, %s170
      %p172 = scmp.eq.s32.totalorder %s20, 0
      %p173 = por %p171, %p172
      %p174 = scmp.le.s32.totalorder 1, %s14
      %p175 = scmp.lt.s32.totalorder %s14, 3
      %p176 = pnand %p174, %p175
      %p177 = pneg %p176
      // Predicated region
      $region9: #{tpu_custom_call.1} parent=5 // pred_check
        _
      $region10: #{tpu_custom_call.1} parent=5 // pred_check_branch
        %179 = sbr.rel (%p176) target = $region12
      $region11: #{tpu_custom_call.1} parent=5 // pred_region
        %s180 = ssub.s32 %s14, 1
        // Predicated region
        $region13: #{tpu_custom_call.1} parent=11 // pred_check
          %p181 = pneg %p75
        $region14: #{tpu_custom_call.1} parent=11 // pred_check_branch
          %183 = sbr.rel (%p181) target = $region16
        $region15: #{tpu_custom_call.1} parent=11 // pred_region
          _
        $region16: #{tpu_custom_call.1} parent=11 // pred_fallthru
          _
        // Predicated region
        $region17: #{tpu_custom_call.1} parent=11 // pred_check
          %p184 = pneg %p96
        $region18: #{tpu_custom_call.1} parent=11 // pred_check_branch
          %186 = sbr.rel (%p184) target = $region20
        $region19: #{tpu_custom_call.1} parent=11 // pred_region
          _
        $region20: #{tpu_custom_call.1} parent=11 // pred_fallthru
          _
        // Predicated region
        $region21: #{tpu_custom_call.1} parent=11 // pred_check
          %p187 = pneg %p117
        $region22: #{tpu_custom_call.1} parent=11 // pred_check_branch
          %189 = sbr.rel (%p187) target = $region24
        $region23: #{tpu_custom_call.1} parent=11 // pred_region
          _
        $region24: #{tpu_custom_call.1} parent=11 // pred_fallthru
          _
        // Predicated region
        $region25: #{tpu_custom_call.1} parent=11 // pred_check
          %p190 = pneg %p138
        $region26: #{tpu_custom_call.1} parent=11 // pred_check_branch
          %192 = sbr.rel (%p190) target = $region28
        $region27: #{tpu_custom_call.1} parent=11 // pred_region
          _
        $region28: #{tpu_custom_call.1} parent=11 // pred_fallthru
          _
      $region12: #{tpu_custom_call.1} parent=5 // pred_fallthru
        _
      %p193 = scmp.lt.s32.totalorder %s14, 2
      // Predicated region
      $region29: #{tpu_custom_call.1} parent=5 // pred_check
        %p194 = pneg %p193
      $region30: #{tpu_custom_call.1} parent=5 // pred_check_branch
        %196 = sbr.rel (%p194) target = $region32
      $region31: #{tpu_custom_call.1} parent=5 // pred_region
        // Predicated region
        $region33: #{tpu_custom_call.1} parent=31 // pred_check
          %p197 = pneg %p48
        $region34: #{tpu_custom_call.1} parent=31 // pred_check_branch
          %199 = sbr.rel (%p197) target = $region36
        $region35: #{tpu_custom_call.1} parent=31 // pred_region
          %s200 = smul.u32 2, %s22
          %p201 = scmp.lt.s32.totalorder %s21, 1
          %s202 = scalar_select %p201, %s21, 1
          %p203 = scmp.lt.s32.totalorder %s200, 1
          %s204 = scalar_select %p203, %s200, 1
          %s205 = smul.addr %s202, 2
          %s206 = sadd.s32 %s204, %s205
          %s207 = smul.addr %s206, 4
          %s208 = scalar_lea.vmem %s0, %s207
          %s209 = smul.u32 2, %s22
        $region36: #{tpu_custom_call.1} parent=31 // pred_fallthru
          _
      $region32: #{tpu_custom_call.1} parent=5 // pred_fallthru
        _
      %p210 = scmp.le.s32.totalorder 1, %s14
      %p211 = scmp.lt.s32.totalorder %s14, 3
      %p212 = pnand %p210, %p211
      %p213 = pneg %p212
      // Predicated region
      $region37: #{tpu_custom_call.1} parent=5 // pred_check
        _
      $region38: #{tpu_custom_call.1} parent=5 // pred_check_branch
        %215 = sbr.rel (%p212) target = $region40
      $region39: #{tpu_custom_call.1} parent=5 // pred_region
        %s216 = ssub.s32 %s14, 1
        %s217 = smul.u32 2, %s24
        %p218 = scmp.lt.s32.totalorder %s23, 1
        %s219 = scalar_select %p218, %s23, 1
        %p220 = scmp.lt.s32.totalorder %s217, 1
        %s221 = scalar_select %p220, %s217, 1
        %s222 = smul.addr %s219, 2
        %s223 = sadd.s32 %s221, %s222
        %s224 = smul.addr %s223, 4
        %s225 = scalar_lea.vmem %s0, %s224
        %p226 = pneg %p54
        %p227 = pneg %p51
        %p228 = pneg %p75
        %p229 = pneg %p72
        %p230 = pneg %p96
        %p231 = pneg %p93
        %p232 = pneg %p117
        %p233 = pneg %p114
        %p234 = pneg %p138
        %p235 = pneg %p135
        %p236 = pneg %p166
        %p237 = pneg %p163
        %s238 = sand.u32 %s153, 1
        %s239 = scalar_lea.sflag [#allocation3], %s238
        %s240 = sand.u32 %s153, 1
        %s241 = smul.addr %s240, 8
        %s242 = scalar_lea.vmem [#allocation2], %s241
        %s243 = smul.u32 2, %s24
        %p244 = scmp.lt.s32.totalorder %s23, 1
        %s245 = scalar_select %p244, %s23, 1
        %p246 = scmp.lt.s32.totalorder %s243, 1
        %s247 = scalar_select %p246, %s243, 1
        %s248 = smul.addr %s245, 2
        %s249 = sadd.s32 %s247, %s248
        %s250 = smul.addr %s249, 4
        %s251 = scalar_lea.vmem %s0, %s250
        %s252 = smul.u32 2, %s24
        %s253 = smul.u32 2, %s24
        %v254 = vld [vmem:[%s251] sm:$0xff]
        %v255 = vld [vmem:[%s1] sm:$0xff]
        %v256 = vld [vmem:[%s1 + $0x8] sm:$0xff]
        %v257 = vld [vmem:[%s1 + $0x10] sm:$0xff]
        %v258 = vld [vmem:[%s1 + $0x18] sm:$0xff]
        %v259 = vld [vmem:[%s2] sm:$0xff]
        %v260 = vld [vmem:[%s2 + $0x8] sm:$0xff]
        %v261 = vld [vmem:[%s2 + $0x10] sm:$0xff]
        %v262 = vld [vmem:[%s2 + $0x18] sm:$0xff]
        %264 = vset.pattern.permute.xlu0 0
        %265 = vperm.xlu0 %264, %v259
        %v266 = vpop.permute.xlu0 %265
        %269 = vset.pattern.permute.xlu0 0
        %270 = vperm.xlu0 %269, %v260
        %v271 = vpop.permute.xlu0 %270
        %274 = vset.pattern.permute.xlu0 0
        %275 = vperm.xlu0 %274, %v261
        %v276 = vpop.permute.xlu0 %275
        %279 = vset.pattern.permute.xlu0 0
        %280 = vperm.xlu0 %279, %v262
        %v281 = vpop.permute.xlu0 %280
        %v284 = vcombine.high %v254, %v254
        %vm285 = vcmask 31744
        %v287 = vsel %vm285, %v255, 0
        %v290 = vsel %vm285, %v256, 0
        %v293 = vsel %vm285, %v257, 0
        %v296 = vsel %vm285, %v258, 0
        %vm298 = vcmask 1043456
        %v299 = vsel %vm298, %v254, 0
        %v301 = vsel %vm298, %v284, 0
        %303 = vmatprep.subr.mxu0 %v301
        %304 = vmatpush1.msra.mxu0 %v299
        %305 = vmatprep.subr.mxu0 0.0
        %306 = vmatpush1.msra.mxu0 0.0
        %307 = vmatprep.subr.mxu0 0.0
        %308 = vmatpush1.msra.mxu0 0.0
        %309 = vmatprep.subr.mxu0 0.0
        %310 = vmatpush1.msra.mxu0 0.0
        %311 = vmatprep.subr.mxu0 0.0
        %312 = vmatpush1.msra.mxu0 0.0
        %313 = vmatprep.subr.mxu0 0.0
        %314 = vmatpush1.msra.mxu0 0.0
        %315 = vmatprep.subr.mxu0 0.0
        %316 = vmatpush1.msra.mxu0 0.0
        %317 = vmatprep.subr.mxu0 0.0
        %318 = vmatpush1.msra.mxu0 0.0
        %319 = vmatprep.subr.mxu0 0.0
        %320 = vmatpush1.msra.mxu0 0.0
        %321 = vmatprep.subr.mxu0 0.0
        %322 = vmatpush1.msra.mxu0 0.0
        %323 = vmatprep.subr.mxu0 0.0
        %324 = vmatpush1.msra.mxu0 0.0
        %325 = vmatprep.subr.mxu0 0.0
        %326 = vmatpush1.msra.mxu0 0.0
        %327 = vmatprep.subr.mxu0 0.0
        %328 = vmatpush1.msra.mxu0 0.0
        %329 = vmatprep.subr.mxu0 0.0
        %330 = vmatpush1.msra.mxu0 0.0
        %331 = vmatprep.subr.mxu0 0.0
        %332 = vmatpush1.msra.mxu0 0.0
        %333 = vmatprep.subr.mxu0 0.0
        %334 = vmatpush1.msra.mxu0 0.0
        %335 = vmatprep.subr.mxu0 0.0
        %336 = vmatpush1.msra.mxu0 0.0
        %337 = vmatprep.subr.mxu0 0.0
        %338 = vmatpush1.msra.mxu0 0.0
        %339 = vmatprep.subr.mxu0 0.0
        %340 = vmatpush1.msra.mxu0 0.0
        %341 = vmatprep.subr.mxu0 0.0
        %342 = vmatpush1.msra.mxu0 0.0
        %343 = vmatprep.subr.mxu0 0.0
        %344 = vmatpush1.msra.mxu0 0.0
        %345 = vmatprep.subr.mxu0 0.0
        %346 = vmatpush1.msra.mxu0 0.0
        %347 = vmatprep.subr.mxu0 0.0
        %348 = vmatpush1.msra.mxu0 0.0
        %349 = vmatprep.subr.mxu0 0.0
        %350 = vmatpush1.msra.mxu0 0.0
        %351 = vmatprep.subr.mxu0 0.0
        %352 = vmatpush1.msra.mxu0 0.0
        %353 = vmatprep.subr.mxu0 0.0
        %354 = vmatpush1.msra.mxu0 0.0
        %355 = vmatprep.subr.mxu0 0.0
        %356 = vmatpush1.msra.mxu0 0.0
        %357 = vmatprep.subr.mxu0 0.0
        %358 = vmatpush1.msra.mxu0 0.0
        %359 = vmatprep.subr.mxu0 0.0
        %360 = vmatpush1.msra.mxu0 0.0
        %361 = vmatprep.subr.mxu0 0.0
        %362 = vmatpush1.msra.mxu0 0.0
        %363 = vmatprep.subr.mxu0 0.0
        %364 = vmatpush1.msra.mxu0 0.0
        %365 = vmatprep.subr.mxu0 0.0
        %366 = vmatpush1.msra.mxu0 0.0
        %367 = vmatprep.mubr.f32.mxu0 0.0
        %368 = vmatmul.mubr.f32.gmra.mrb[0].mxu0 %v287
        %v369 = vpop.f32.mrb[0].mxu0
        %v370 = vadd.f32 %v266, %v369
        %v371 = vpop.f32.mrb[0].mxu0
        %v372 = vadd.f32 %v266, %v371
        %373 = vmatprep.mubr.f32.mxu0 0.0
        %374 = vmatmul.mubr.f32.gmra.mrb[0].mxu0 %v290
        %v375 = vpop.f32.mrb[0].mxu0
        %v376 = vadd.f32 %v271, %v375
        %v377 = vpop.f32.mrb[0].mxu0
        %v378 = vadd.f32 %v271, %v377
        %379 = vmatprep.mubr.f32.mxu0 0.0
        %380 = vmatmul.mubr.f32.gmra.mrb[0].mxu0 %v293
        %v381 = vpop.f32.mrb[0].mxu0
        %v382 = vadd.f32 %v276, %v381
        %v383 = vpop.f32.mrb[0].mxu0
        %v384 = vadd.f32 %v276, %v383
        %385 = vmatprep.mubr.f32.mxu0 0.0
        %386 = vmatmul.mubr.f32.gmra.mrb[0].mxu0 %v296
        %v387 = vpop.f32.mrb[0].mxu0
        %v388 = vadd.f32 %v281, %v387
        %v389 = vpop.f32.mrb[0].mxu0
        %v390 = vadd.f32 %v281, %v389
        %391 = vdwg.mxu0
        %v392 = vmul.f32 %v370, 0.5
        %v393 = vmul.f32 %v372, 0.5
        %v394 = vmul.f32 %v376, 0.5
        %v395 = vmul.f32 %v378, 0.5
        %v396 = vmul.f32 %v382, 0.5
        %v397 = vmul.f32 %v384, 0.5
        %v398 = vmul.f32 %v388, 0.5
        %v399 = vmul.f32 %v390, 0.5
        %v400 = vmul.f32 %v370, 0.70710677
        %v401 = vmul.f32 %v372, 0.70710677
        %v402 = vmul.f32 %v376, 0.70710677
        %v403 = vmul.f32 %v378, 0.70710677
        %v404 = vmul.f32 %v382, 0.70710677
        %v405 = vmul.f32 %v384, 0.70710677
        %v406 = vmul.f32 %v388, 0.70710677
        %v407 = vmul.f32 %v390, 0.70710677
        %vm408 = vcmp.lt.f32.partialorder %v400, 0.0
        %vm409 = vcmp.lt.f32.partialorder %v401, 0.0
        %vm410 = vcmp.lt.f32.partialorder %v402, 0.0
        %vm411 = vcmp.lt.f32.partialorder %v403, 0.0
        %vm412 = vcmp.lt.f32.partialorder %v404, 0.0
        %vm413 = vcmp.lt.f32.partialorder %v405, 0.0
        %vm414 = vcmp.lt.f32.partialorder %v406, 0.0
        %vm415 = vcmp.lt.f32.partialorder %v407, 0.0
        %v416 = vsel %vm408, -1.0, 1.0
        %v417 = vsel %vm409, -1.0, 1.0
        %v418 = vsel %vm410, -1.0, 1.0
        %v419 = vsel %vm411, -1.0, 1.0
        %v420 = vsel %vm412, -1.0, 1.0
        %v421 = vsel %vm413, -1.0, 1.0
        %v422 = vsel %vm414, -1.0, 1.0
        %v423 = vsel %vm415, -1.0, 1.0
        %v424 = vand.u32 2147483647, %v400
        %v425 = vand.u32 2147483647, %v401
        %v426 = vand.u32 2147483647, %v402
        %v427 = vand.u32 2147483647, %v403
        %v428 = vand.u32 2147483647, %v404
        %v429 = vand.u32 2147483647, %v405
        %v430 = vand.u32 2147483647, %v406
        %v431 = vand.u32 2147483647, %v407
        %v432 = vmul.f32 %v424, 0.3275911
        %v433 = vmul.f32 %v425, 0.3275911
        %v434 = vmul.f32 %v426, 0.3275911
        %v435 = vmul.f32 %v427, 0.3275911
        %v436 = vmul.f32 %v428, 0.3275911
        %v437 = vmul.f32 %v429, 0.3275911
        %v438 = vmul.f32 %v430, 0.3275911
        %v439 = vmul.f32 %v431, 0.3275911
        %v440 = vadd.f32 %v432, 1.0
        %v441 = vadd.f32 %v433, 1.0
        %v442 = vadd.f32 %v434, 1.0
        %v443 = vadd.f32 %v435, 1.0
        %v444 = vadd.f32 %v436, 1.0
        %v445 = vadd.f32 %v437, 1.0
        %v446 = vadd.f32 %v438, 1.0
        %v447 = vadd.f32 %v439, 1.0
        %v448 = vrcp.pop %v440
        %v449 = vmul.f32 1.0, %v448
        %v450 = vrcp.pop %v441
        %v451 = vmul.f32 1.0, %v450
        %v452 = vrcp.pop %v442
        %v453 = vmul.f32 1.0, %v452
        %v454 = vrcp.pop %v443
        %v455 = vmul.f32 1.0, %v454
        %v456 = vrcp.pop %v444
        %v457 = vmul.f32 1.0, %v456
        %v458 = vrcp.pop %v445
        %v459 = vmul.f32 1.0, %v458
        %v460 = vrcp.pop %v446
        %v461 = vmul.f32 1.0, %v460
        %v462 = vrcp.pop %v447
        %v463 = vmul.f32 1.0, %v462
        %v464 = vmul.f32 %v449, 1.0614054
        %v465 = vmul.f32 %v451, 1.0614054
        %v466 = vmul.f32 %v453, 1.0614054
        %v467 = vmul.f32 %v455, 1.0614054
        %v468 = vmul.f32 %v457, 1.0614054
        %v469 = vmul.f32 %v459, 1.0614054
        %v470 = vmul.f32 %v461, 1.0614054
        %v471 = vmul.f32 %v463, 1.0614054
        %v472 = vadd.f32 %v464, -1.4531521
        %v473 = vadd.f32 %v465, -1.4531521
        %v474 = vadd.f32 %v466, -1.4531521
        %v475 = vadd.f32 %v467, -1.4531521
        %v476 = vadd.f32 %v468, -1.4531521
        %v477 = vadd.f32 %v469, -1.4531521
        %v478 = vadd.f32 %v470, -1.4531521
        %v479 = vadd.f32 %v471, -1.4531521
        %v480 = vmul.f32 %v472, %v449
        %v481 = vmul.f32 %v473, %v451
        %v482 = vmul.f32 %v474, %v453
        %v483 = vmul.f32 %v475, %v455
        %v484 = vmul.f32 %v476, %v457
        %v485 = vmul.f32 %v477, %v459
        %v486 = vmul.f32 %v478, %v461
        %v487 = vmul.f32 %v479, %v463
        %v488 = vadd.f32 %v480, 1.4214138
        %v489 = vadd.f32 %v481, 1.4214138
        %v490 = vadd.f32 %v482, 1.4214138
        %v491 = vadd.f32 %v483, 1.4214138
        %v492 = vadd.f32 %v484, 1.4214138
        %v493 = vadd.f32 %v485, 1.4214138
        %v494 = vadd.f32 %v486, 1.4214138
        %v495 = vadd.f32 %v487, 1.4214138
        %v496 = vmul.f32 %v488, %v449
        %v497 = vmul.f32 %v489, %v451
        %v498 = vmul.f32 %v490, %v453
        %v499 = vmul.f32 %v491, %v455
        %v500 = vmul.f32 %v492, %v457
        %v501 = vmul.f32 %v493, %v459
        %v502 = vmul.f32 %v494, %v461
        %v503 = vmul.f32 %v495, %v463
        %v504 = vadd.f32 %v496, -0.28449672
        %v505 = vadd.f32 %v497, -0.28449672
        %v506 = vadd.f32 %v498, -0.28449672
        %v507 = vadd.f32 %v499, -0.28449672
        %v508 = vadd.f32 %v500, -0.28449672
        %v509 = vadd.f32 %v501, -0.28449672
        %v510 = vadd.f32 %v502, -0.28449672
        %v511 = vadd.f32 %v503, -0.28449672
        %v512 = vmul.f32 %v504, %v449
        %v513 = vmul.f32 %v505, %v451
        %v514 = vmul.f32 %v506, %v453
        %v515 = vmul.f32 %v507, %v455
        %v516 = vmul.f32 %v508, %v457
        %v517 = vmul.f32 %v509, %v459
        %v518 = vmul.f32 %v510, %v461
        %v519 = vmul.f32 %v511, %v463
        %v520 = vadd.f32 %v512, 0.2548296
        %v521 = vadd.f32 %v513, 0.2548296
        %v522 = vadd.f32 %v514, 0.2548296
        %v523 = vadd.f32 %v515, 0.2548296
        %v524 = vadd.f32 %v516, 0.2548296
        %v525 = vadd.f32 %v517, 0.2548296
        %v526 = vadd.f32 %v518, 0.2548296
        %v527 = vadd.f32 %v519, 0.2548296
        %v528 = vmul.f32 %v520, %v449
        %v529 = vmul.f32 %v521, %v451
        %v530 = vmul.f32 %v522, %v453
        %v531 = vmul.f32 %v523, %v455
        %v532 = vmul.f32 %v524, %v457
        %v533 = vmul.f32 %v525, %v459
        %v534 = vmul.f32 %v526, %v461
        %v535 = vmul.f32 %v527, %v463
        %v536 = vsub.f32 0.0, %v424
        %v537 = vsub.f32 0.0, %v425
        %v538 = vsub.f32 0.0, %v426
        %v539 = vsub.f32 0.0, %v427
        %v540 = vsub.f32 0.0, %v428
        %v541 = vsub.f32 0.0, %v429
        %v542 = vsub.f32 0.0, %v430
        %v543 = vsub.f32 0.0, %v431
        %v544 = vmul.f32 %v536, %v424
        %v545 = vmul.f32 %v537, %v425
        %v546 = vmul.f32 %v538, %v426
        %v547 = vmul.f32 %v539, %v427
        %v548 = vmul.f32 %v540, %v428
        %v549 = vmul.f32 %v541, %v429
        %v550 = vmul.f32 %v542, %v430
        %v551 = vmul.f32 %v543, %v431
        %v552 = vmul.f32 %v544, 1.442695
        %v553 = vpow.pop %v552
        %v554 = vmul.f32 %v545, 1.442695
        %v555 = vpow.pop %v554
        %v556 = vmul.f32 %v546, 1.442695
        %v557 = vpow.pop %v556
        %v558 = vmul.f32 %v547, 1.442695
        %v559 = vpow.pop %v558
        %v560 = vmul.f32 %v548, 1.442695
        %v561 = vpow.pop %v560
        %v562 = vmul.f32 %v549, 1.442695
        %v563 = vpow.pop %v562
        %v564 = vmul.f32 %v550, 1.442695
        %v565 = vpow.pop %v564
        %v566 = vmul.f32 %v551, 1.442695
        %v567 = vpow.pop %v566
        %v568 = vmul.f32 %v528, %v553
        %v569 = vmul.f32 %v529, %v555
        %v570 = vmul.f32 %v530, %v557
        %v571 = vmul.f32 %v531, %v559
        %v572 = vmul.f32 %v532, %v561
        %v573 = vmul.f32 %v533, %v563
        %v574 = vmul.f32 %v534, %v565
        %v575 = vmul.f32 %v535, %v567
        %v576 = vsub.f32 1.0, %v568
        %v577 = vsub.f32 1.0, %v569
        %v578 = vsub.f32 1.0, %v570
        %v579 = vsub.f32 1.0, %v571
        %v580 = vsub.f32 1.0, %v572
        %v581 = vsub.f32 1.0, %v573
        %v582 = vsub.f32 1.0, %v574
        %v583 = vsub.f32 1.0, %v575
        %v584 = vmul.f32 %v416, %v576
        %v585 = vmul.f32 %v417, %v577
        %v586 = vmul.f32 %v418, %v578
        %v587 = vmul.f32 %v419, %v579
        %v588 = vmul.f32 %v420, %v580
        %v589 = vmul.f32 %v421, %v581
        %v590 = vmul.f32 %v422, %v582
        %v591 = vmul.f32 %v423, %v583
        %v592 = vadd.f32 %v584, 1.0
        %v593 = vadd.f32 %v585, 1.0
        %v594 = vadd.f32 %v586, 1.0
        %v595 = vadd.f32 %v587, 1.0
        %v596 = vadd.f32 %v588, 1.0
        %v597 = vadd.f32 %v589, 1.0
        %v598 = vadd.f32 %v590, 1.0
        %v599 = vadd.f32 %v591, 1.0
        %v600 = vmul.f32 %v392, %v592
        %v601 = vmul.f32 %v393, %v593
        %v602 = vmul.f32 %v394, %v594
        %v603 = vmul.f32 %v395, %v595
        %v604 = vmul.f32 %v396, %v596
        %v605 = vmul.f32 %v397, %v597
        %v606 = vmul.f32 %v398, %v598
        %v607 = vmul.f32 %v399, %v599
        %v608 = vld [vmem:[%s3] sm:$0xf]
        %v609 = vld [vmem:[%s4] sm:$0xf]
        %611 = vset.pattern.permute.xlu0 0
        %612 = vperm.xlu0 %611, %v609
        %v613 = vpop.permute.xlu0 %612
        %vm615 = vcmask 261120
        %v617 = vsel %vm615, %v608, 0
        %619 = vmatprep.subr.mxu0 %v601
        %620 = vmatpush1.msra.mxu0 %v600
        %621 = vmatprep.subr.mxu0 %v603
        %622 = vmatpush1.msra.mxu0 %v602
        %623 = vmatprep.subr.mxu0 %v605
        %624 = vmatpush1.msra.mxu0 %v604
        %625 = vmatprep.subr.mxu0 %v607
        %626 = vmatpush1.msra.mxu0 %v606
        %627 = vmatprep.subr.mxu0 0.0
        %628 = vmatpush1.msra.mxu0 0.0
        %629 = vmatprep.subr.mxu0 0.0
        %630 = vmatpush1.msra.mxu0 0.0
        %631 = vmatprep.subr.mxu0 0.0
        %632 = vmatpush1.msra.mxu0 0.0
        %633 = vmatprep.subr.mxu0 0.0
        %634 = vmatpush1.msra.mxu0 0.0
        %635 = vmatprep.subr.mxu0 0.0
        %636 = vmatpush1.msra.mxu0 0.0
        %637 = vmatprep.subr.mxu0 0.0
        %638 = vmatpush1.msra.mxu0 0.0
        %639 = vmatprep.subr.mxu0 0.0
        %640 = vmatpush1.msra.mxu0 0.0
        %641 = vmatprep.subr.mxu0 0.0
        %642 = vmatpush1.msra.mxu0 0.0
        %643 = vmatprep.subr.mxu0 0.0
        %644 = vmatpush1.msra.mxu0 0.0
        %645 = vmatprep.subr.mxu0 0.0
        %646 = vmatpush1.msra.mxu0 0.0
        %647 = vmatprep.subr.mxu0 0.0
        %648 = vmatpush1.msra.mxu0 0.0
        %649 = vmatprep.subr.mxu0 0.0
        %650 = vmatpush1.msra.mxu0 0.0
        %651 = vmatprep.subr.mxu0 0.0
        %652 = vmatpush1.msra.mxu0 0.0
        %653 = vmatprep.subr.mxu0 0.0
        %654 = vmatpush1.msra.mxu0 0.0
        %655 = vmatprep.subr.mxu0 0.0
        %656 = vmatpush1.msra.mxu0 0.0
        %657 = vmatprep.subr.mxu0 0.0
        %658 = vmatpush1.msra.mxu0 0.0
        %659 = vmatprep.subr.mxu0 0.0
        %660 = vmatpush1.msra.mxu0 0.0
        %661 = vmatprep.subr.mxu0 0.0
        %662 = vmatpush1.msra.mxu0 0.0
        %663 = vmatprep.subr.mxu0 0.0
        %664 = vmatpush1.msra.mxu0 0.0
        %665 = vmatprep.subr.mxu0 0.0
        %666 = vmatpush1.msra.mxu0 0.0
        %667 = vmatprep.subr.mxu0 0.0
        %668 = vmatpush1.msra.mxu0 0.0
        %669 = vmatprep.subr.mxu0 0.0
        %670 = vmatpush1.msra.mxu0 0.0
        %671 = vmatprep.subr.mxu0 0.0
        %672 = vmatpush1.msra.mxu0 0.0
        %673 = vmatprep.subr.mxu0 0.0
        %674 = vmatpush1.msra.mxu0 0.0
        %675 = vmatprep.subr.mxu0 0.0
        %676 = vmatpush1.msra.mxu0 0.0
        %677 = vmatprep.subr.mxu0 0.0
        %678 = vmatpush1.msra.mxu0 0.0
        %679 = vmatprep.subr.mxu0 0.0
        %680 = vmatpush1.msra.mxu0 0.0
        %681 = vmatprep.subr.mxu0 0.0
        %682 = vmatpush1.msra.mxu0 0.0
        %683 = vmatprep.mubr.f32.mxu0 0.0
        %684 = vmatmul.mubr.f32.gmra.mrb[0].mxu0 %v617
        %v685 = vpop.f32.mrb[0].mxu0
        %v686 = vadd.f32 %v613, %v685
        %v687 = vpop.f32.mrb[0].mxu0
        %v688 = vadd.f32 %v613, %v687
        %689 = vdwg.mxu0
        %v692 = vcombine.low %v686, %v688
        %694 = vst [vmem:[%s242] sm:$0xff] %v692
        %s695 = sand.u32 %s153, 1
        %s696 = scalar_lea.sflag [#allocation3], %s695
        %s697 = sand.u32 %s153, 1
        %s698 = smul.addr %s697, 8
        %s699 = scalar_lea.vmem [#allocation2], %s698
        // Predicated region
        $region41: #{tpu_custom_call.1} parent=39 // pred_check
          %p700 = pneg %p163
        $region42: #{tpu_custom_call.1} parent=39 // pred_check_branch
          %702 = sbr.rel (%p700) target = $region44
        $region43: #{tpu_custom_call.1} parent=39 // pred_region
          %s703 = smul.u32 2, %s24
          %s705 = ssub.s32 128, 128
          %706 = vsyncadd %s696, %s705
          %s707 = smul.addr %s23, 2
          %s708 = sadd.s32 %s703, %s707
          %s709 = smul.addr %s708, 64
          %s710 = scalar_lea.hbm %s5, %s709
          %s712 = sshll.u32 %s699, 4
          %s713 = int_to_ptr.vmem [resolvable:$true] %s712
          %715 = dma.vmem_to_hbm [thread:$0]  %s713, 128, %s710, %s696
        $region44: #{tpu_custom_call.1} parent=39 // pred_fallthru
          _
      $region40: #{tpu_custom_call.1} parent=5 // pred_fallthru
        _
      %p716 = scmp.le.s32.totalorder 2, %s14
      // Predicated region
      $region45: #{tpu_custom_call.1} parent=5 // pred_check
        %p717 = pneg %p716
      $region46: #{tpu_custom_call.1} parent=5 // pred_check_branch
        %719 = sbr.rel (%p717) target = $region48
      $region47: #{tpu_custom_call.1} parent=5 // pred_region
        %s720 = ssub.s32 %s14, 2
        // Predicated region
        $region49: #{tpu_custom_call.1} parent=47 // pred_check
          %p721 = pneg %p169
        $region50: #{tpu_custom_call.1} parent=47 // pred_check_branch
          %723 = sbr.rel (%p721) target = $region52
        $region51: #{tpu_custom_call.1} parent=47 // pred_region
          %s724 = sand.u32 %s154, 1
          %s725 = scalar_lea.sflag [#allocation3], %s724
          %s726 = sand.u32 %s154, 1
          %s727 = smul.addr %s726, 8
          %s728 = scalar_lea.vmem [#allocation2], %s727
          %729 = dma.done %s725, 128
        $region52: #{tpu_custom_call.1} parent=47 // pred_fallthru
          _
      $region48: #{tpu_custom_call.1} parent=5 // pred_fallthru
        _
    $region6: #{tpu_custom_call.1} parent=1 // loop_footer
      %s18 = sadd.s32 1, %s14
    $region7: #{tpu_custom_call.1} parent=1 // loop_footer_branch
      %13 = sbr.rel target = $region3
    $region8: #{tpu_custom_call.1} parent=1 // loop_exit
      _
    %730 = vsyncpa [#allocation3], 1
    %s731 = scalar_lea.sflag [#allocation3], 1
    %732 = vsyncpa %s731, 1

</llo_original>
